<compile_context>
chip_gen: v7x
topology: tpu7x:2x2x1
jax: 0.10.0
libtpu: 0.0.40
codegen_flags: <defaults>
</compile_context>

<pallas_src>
import functools
import math

import jax
import jax.numpy as jnp
from jax.experimental import pallas as pl
from jax.experimental.pallas import tpu as pltpu

EPS = 1e-6


def _round_up(x, m):
    return ((x + m - 1) // m) * m


def _choose_tile(dim, target, align):
    """Pick (tile, padded_dim) for one axis.

    Preference: (1) the full axis when it fits the target (always layout-legal),
    (2) the largest aligned divisor of `dim` that is >= target/4 (no padding),
    (3) near-target aligned tiles over a minimally zero-padded axis (keeps the
    DMA grain at the sweet spot instead of one whole-axis VMEM-busting block).
    """
    if dim <= target:
        return dim, dim
    tgt = max(align, (target // align) * align)
    t = tgt
    while t >= align:
        if dim % t == 0:
            if t * 4 >= tgt:
                return t, dim
            break
        t -= align
    n_blocks = -(-dim // tgt)
    t = _round_up(-(-dim // n_blocks), align)
    return t, n_blocks * t


def _tpu_generation_params():
    """(x-tile byte target, vmem_limit_bytes) tuned per TPU generation."""
    kind = ""
    try:
        kind = jax.devices()[0].device_kind.lower()
    except Exception:
        pass
    vmem_cap = None
    try:
        vmem_cap = int(pltpu.get_tpu_info().vmem_capacity_bytes)
    except Exception:
        pass
    if "v7" in kind or "7x" in kind or (vmem_cap is not None and vmem_cap <= (64 << 20)):
        return 8 << 20, 48 << 20          # v7x: only 64 MiB VMEM -> cap scoped limit
    if "v6" in kind or "v5p" in kind:
        return 12 << 20, 96 << 20         # 128 MiB VMEM, fast HBM -> bigger grain
    if "v5" in kind:
        return 4 << 20, 64 << 20          # v5e: 4 MiB already at HBM roofline
    return 8 << 20, 48 << 20              # unknown generation: safe middle ground


def seq_gem_kernel(p_ref, x_ref, o_ref, acc_ref, *,
                   inv_sl, p_static, sl_chunk, n_pad_sl):
    """p_ref: SMEM (1,) f32; x_ref: VMEM (bt, st, dt); o_ref: VMEM (bt, dt);
    acc_ref: VMEM (bt, dt) f32 accumulator (resident across the SL grid axis)."""
    s_idx = pl.program_id(2)

    @pl.when(s_idx == 0)
    def _():
        acc_ref[...] = jnp.zeros_like(acc_ref)

    int_fast = (p_static is not None and p_static == round(p_static)
                and 1.0 <= p_static <= 8.0)

    def clamp_pow(v):
        v = jnp.maximum(v, EPS)                       # clamp(min=eps)
        if int_fast:                                  # module init p=3: VPU-only
            r = v
            for _ in range(int(p_static) - 1):
                r = r * v
            return r
        if p_static is not None:
            return jnp.exp(jnp.float32(p_static) * jnp.log(v))
        # TODO(synk): runtime (learnable) p costs 2 EUP transcendentals/element;
        # specialize on the concrete value at trace time whenever it is known.
        return jnp.exp(p_ref[0] * jnp.log(v))

    # Statically-unrolled SL chunks: clamp/pow on the VPU, one cross-sublane
    # reduce per chunk on the idle XLU, accumulate into the VMEM-resident acc.
    # The bounded chunk keeps the live f32 slab small (no vreg-spill storms).
    _, st, _ = x_ref.shape
    n_chunks = -(-st // sl_chunk)
    for g in range(n_chunks):
        lo = g * sl_chunk
        hi = min(st, lo + sl_chunk)
        xg = x_ref[:, lo:hi, :].astype(jnp.float32)
        acc_ref[...] += jnp.sum(clamp_pow(xg), axis=1)
    # TODO(synk): for bf16 inputs on v7x the VPU can become the binding slot;
    # the SL accumulation could be offloaded to the idle MXU via a ones-vector
    # dot_general if this kernel ever shows up VALU-bound there.

    @pl.when(s_idx == pl.num_programs(2) - 1)
    def _():
        total = acc_ref[...]
        if p_static is not None:
            inv_p = jnp.float32(1.0 / p_static)
        else:
            inv_p = 1.0 / p_ref[0]
        if n_pad_sl:
            # Zero-padded SL rows were clamped to eps, contributing exactly
            # eps**p each; remove them, then clamp at the true mean's lower bound.
            if p_static is not None:
                eps_pow_p = jnp.full_like(total, EPS ** p_static)
            else:
                eps_pow_p = jnp.exp(jnp.full_like(total, math.log(EPS)) * p_ref[0])
            total = total - jnp.float32(n_pad_sl) * eps_pow_p
            m = jnp.maximum(total * inv_sl, eps_pow_p)
        else:
            m = total * inv_sl                        # mean over the true SL
        o_ref[...] = jnp.exp(jnp.log(m) * inv_p).astype(o_ref.dtype)


def seq_gem_pallas(x, p=3.0, *, max_tile_bytes=None):
    """x: (B, SL, D). p: Python scalar (static fast path) or traced/array scalar
    (runtime path, matching the learnable parameter). Returns (B, D) in x.dtype."""
    B, SL, D = x.shape
    itemsize = jnp.dtype(x.dtype).itemsize

    p_static = None
    if isinstance(p, (int, float)) and not isinstance(p, bool):
        p_static = float(p)
    p_arr = jnp.asarray(p, jnp.float32).reshape((1,))

    tile_bytes, vmem_limit = _tpu_generation_params()
    if max_tile_bytes is not None:
        tile_bytes = max(1024, min(tile_bytes, int(max_tile_bytes)))

    # Batch tile: the output block's second-minor dim must be a multiple of 8
    # or the full axis.
    if B <= 8:
        b_tile, b_pad = B, B
    else:
        b_tile, b_pad = 8, _round_up(B, 8)

    # D (lane) tile: lane-dense output stores (multiple of 128) unless D is small.
    d_target = 1024 if tile_bytes >= (8 << 20) else 512
    d_tile, d_pad = _choose_tile(D, d_target, 128)

    # Megacore (v7x has 2 TensorCores): guarantee >= 2 parallel (B, D) blocks
    # when D allows a clean lane-aligned split; sl_tile below re-grows the grain.
    if (b_pad // b_tile) * (d_pad // d_tile) == 1 and d_pad % 256 == 0:
        d_tile = d_pad // 2

    # SL (reduction) tile: dtype-aware sublane alignment; sized so the x block
    # hits the per-generation DMA grain regardless of batch size.
    sl_align = max(8, 32 // itemsize)            # 8 f32, 16 bf16, 32 int8/fp8
    sl_target = max(sl_align, tile_bytes // (b_tile * d_tile * itemsize))
    sl_tile, sl_pad = _choose_tile(SL, sl_target, sl_align)

    # Zero-pad awkward shapes. Padded B/D rows/lanes are sliced off afterwards;
    # padded SL rows are corrected exactly in the kernel's finalize step.
    if (b_pad, sl_pad, d_pad) != (B, SL, D):
        x = jnp.pad(x, ((0, b_pad - B), (0, sl_pad - SL), (0, d_pad - D)))
    n_pad_sl = sl_pad - SL

    # In-kernel SL chunk size (~512 KiB of live f32 per chunk).
    sl_chunk = max(sl_align,
                   ((512 * 1024) // (b_tile * d_tile * 4) // sl_align) * sl_align)
    sl_chunk = min(sl_chunk, sl_tile)

    grid = (b_pad // b_tile, d_pad // d_tile, sl_pad // sl_tile)

    kernel = functools.partial(
        seq_gem_kernel, inv_sl=1.0 / SL, p_static=p_static,
        sl_chunk=sl_chunk, n_pad_sl=n_pad_sl)

    int_fast = (p_static is not None and p_static == round(p_static)
                and 1.0 <= p_static <= 8.0)
    n_elem = b_pad * sl_pad * d_pad
    if int_fast:
        flops = (int(p_static) + 1) * n_elem + 4 * b_pad * d_pad
        transcendentals = 2 * b_pad * d_pad
    else:
        flops = 3 * n_elem + 4 * b_pad * d_pad
        transcendentals = 2 * n_elem + 2 * b_pad * d_pad
    bytes_accessed = n_elem * itemsize + b_pad * d_pad * itemsize + 4

    out = pl.pallas_call(
        kernel,
        out_shape=jax.ShapeDtypeStruct((b_pad, d_pad), x.dtype),
        grid=grid,
        in_specs=[
            pl.BlockSpec(memory_space=pltpu.MemorySpace.SMEM),               # p
            pl.BlockSpec((b_tile, sl_tile, d_tile), lambda b, d, s: (b, s, d)),
        ],
        out_specs=pl.BlockSpec((b_tile, d_tile), lambda b, d, s: (b, d)),
        scratch_shapes=[pltpu.VMEM((b_tile, d_tile), jnp.float32)],
        compiler_params=pltpu.CompilerParams(
            dimension_semantics=("parallel", "parallel", "arbitrary"),
            vmem_limit_bytes=vmem_limit,
        ),
        cost_estimate=pl.CostEstimate(
            flops=flops, transcendentals=transcendentals,
            bytes_accessed=bytes_accessed),
    )(p_arr, x)

    if (b_pad, d_pad) != (B, D):
        out = out[:B, :D]
    return out


def seq_gem_reference(x, p):
    # Pure-JAX reference matching the PyTorch module (clamp -> pow -> mean -> root).
    xc = jnp.maximum(x.astype(jnp.float32), EPS)
    pv = jnp.asarray(p, jnp.float32).reshape(())
    return (jnp.mean(xc ** pv, axis=1) ** (1.0 / pv)).astype(x.dtype)


if __name__ == "__main__":
    # Deterministic parameter init, as in SeqGeM.__init__: p = ones(1) * 3
    p = 3.0
    key = jax.random.PRNGKey(0)
    k1, k2, k3 = jax.random.split(key, 3)

    # Small shape consistent with the module's forward (B, SL, D).
    B, SL, D = 2, 8, 32
    x = jax.random.normal(k1, (B, SL, D), dtype=jnp.float32)
    out = jax.block_until_ready(seq_gem_pallas(x, p))
    ref = seq_gem_reference(x, p)
    assert out.shape == (B, D), f"bad shape {out.shape}"
    assert jnp.allclose(out, ref, rtol=1e-4, atol=1e-5), "mismatch (small)"

    # Multi-chunk SL accumulation + forced 2-way D split (static p=3 fast path).
    x2 = jax.random.normal(k2, (4, 512, 256), dtype=jnp.float32)
    out2 = jax.block_until_ready(seq_gem_pallas(x2, p))
    ref2 = seq_gem_reference(x2, p)
    assert jnp.allclose(out2, ref2, rtol=1e-4, atol=1e-5), "mismatch (tiled)"

    # Runtime (learnable-parameter) p path: generic exp(p*log(x)) branch.
    p_rt = jnp.ones((1,), jnp.float32) * 3.0
    out3 = jax.block_until_ready(seq_gem_pallas(x2, p_rt))
    assert jnp.allclose(out3, ref2, rtol=1e-4, atol=1e-5), "mismatch (runtime p)"

    # bf16 + ragged SL at tiny size (via the tile-byte override): exercises
    # dtype-aware sublane alignment, SL zero-padding with the exact eps**p
    # correction, the megacore D split, and a multi-step SL reduction.
    x4 = jax.random.normal(k3, (2, 100, 256), dtype=jnp.bfloat16)
    out4 = jax.block_until_ready(seq_gem_pallas(x4, p, max_tile_bytes=32 * 1024))
    ref4 = seq_gem_reference(x4, p)
    assert out4.shape == (2, 256), f"bad shape {out4.shape}"
    assert jnp.allclose(out4.astype(jnp.float32), ref4.astype(jnp.float32),
                        rtol=2e-2, atol=2e-2), "mismatch (bf16/ragged)"

    print("KERNEL_OK")
</pallas_src>

<mosaic_0001>
module attributes {stable_mosaic.version = 11 : i64} {
  func.func @seq_gem_kernel(%arg0: i32, %arg1: i32, %arg2: i32, %arg3: memref<1xf32, #tpu.memory_space<smem>>, %arg4: memref<2x8x32xf32, #tpu.memory_space<vmem>>, %arg5: memref<2x32xf32, #tpu.memory_space<vmem>>, %arg6: memref<2x32xf32, #tpu.memory_space<vmem>>) attributes {dimension_semantics = [#tpu.dimension_semantics<parallel>, #tpu.dimension_semantics<parallel>, #tpu.dimension_semantics<arbitrary>], iteration_bounds = array<i64: 1, 1, 1>, scalar_prefetch = 0 : i64, scratch_operands = 1 : i64, tpu.core_type = #tpu.core_type<tc>, window_params = [{transform_indices = @transform_0, window_bounds = array<i64: 1>}, {transform_indices = @transform_1, window_bounds = array<i64: 2, 8, 32>}, {transform_indices = @transform_2, window_bounds = array<i64: 2, 32>}]} {
    %c0_i32 = arith.constant 0 : i32
    %0 = arith.cmpi eq, %arg2, %c0_i32 : i32
    %1 = arith.extui %0 : i1 to i32
    %c0_i32_0 = arith.constant 0 : i32
    %2 = arith.cmpi ne, %1, %c0_i32_0 : i32
    scf.if %2 {
      %cst_10 = arith.constant 0.000000e+00 : f32
      %15 = vector.broadcast %cst_10 : f32 to vector<2x32xf32>
      %c0_11 = arith.constant 0 : index
      %c0_12 = arith.constant 0 : index
      %16 = vector.load %arg6[%c0_11, %c0_12] : memref<2x32xf32, #tpu.memory_space<vmem>>, vector<2x32xf32>
      tpu.vector_store %arg6[%c0_11, %c0_12], %15 {strides = array<i32>} : memref<2x32xf32, #tpu.memory_space<vmem>>, vector<2x32xf32>,
    } else {
    }
    %c0 = arith.constant 0 : index
    %c0_1 = arith.constant 0 : index
    %c0_2 = arith.constant 0 : index
    %3 = vector.load %arg4[%c0, %c0_1, %c0_2] : memref<2x8x32xf32, #tpu.memory_space<vmem>>, vector<2x8x32xf32>
    %c0_3 = arith.constant 0 : index
    %c0_4 = arith.constant 0 : index
    %4 = vector.load %arg6[%c0_3, %c0_4] : memref<2x32xf32, #tpu.memory_space<vmem>>, vector<2x32xf32>
    %cst = arith.constant 9.99999997E-7 : f32
    %5 = vector.broadcast %cst : f32 to vector<2x8x32xf32>
    %6 = arith.maximumf %3, %5 : vector<2x8x32xf32>
    %7 = arith.mulf %6, %6 : vector<2x8x32xf32>
    %8 = arith.mulf %7, %6 : vector<2x8x32xf32>
    %cst_5 = arith.constant dense<0.000000e+00> : vector<2x32xf32>
    %9 = vector.multi_reduction <add>, %8, %cst_5 [1] : vector<2x8x32xf32> to vector<2x32xf32>
    %10 = arith.addf %4, %9 : vector<2x32xf32>
    %c0_6 = arith.constant 0 : index
    %c0_7 = arith.constant 0 : index
    %11 = vector.load %arg6[%c0_6, %c0_7] : memref<2x32xf32, #tpu.memory_space<vmem>>, vector<2x32xf32>
    tpu.vector_store %arg6[%c0_6, %c0_7], %10 {strides = array<i32>} : memref<2x32xf32, #tpu.memory_space<vmem>>, vector<2x32xf32>,
    %c0_i32_8 = arith.constant 0 : i32
    %12 = arith.cmpi eq, %arg2, %c0_i32_8 : i32
    %13 = arith.extui %12 : i1 to i32
    %c0_i32_9 = arith.constant 0 : i32
    %14 = arith.cmpi ne, %13, %c0_i32_9 : i32
    scf.if %14 {
      %c0_10 = arith.constant 0 : index
      %c0_11 = arith.constant 0 : index
      %15 = vector.load %arg6[%c0_10, %c0_11] : memref<2x32xf32, #tpu.memory_space<vmem>>, vector<2x32xf32>
      %cst_12 = arith.constant 1.250000e-01 : f32
      %16 = vector.broadcast %cst_12 : f32 to vector<2x32xf32>
      %17 = arith.mulf %15, %16 : vector<2x32xf32>
      %18 = math.log %17 : vector<2x32xf32>
      %cst_13 = arith.constant 0.333333343 : f32
      %19 = vector.broadcast %cst_13 : f32 to vector<2x32xf32>
      %20 = arith.mulf %18, %19 : vector<2x32xf32>
      %21 = math.exp %20 : vector<2x32xf32>
      %c0_14 = arith.constant 0 : index
      %c0_15 = arith.constant 0 : index
      %22 = vector.load %arg5[%c0_14, %c0_15] : memref<2x32xf32, #tpu.memory_space<vmem>>, vector<2x32xf32>
      tpu.vector_store %arg5[%c0_14, %c0_15], %21 {strides = array<i32>} : memref<2x32xf32, #tpu.memory_space<vmem>>, vector<2x32xf32>,
    } else {
    }
    return
  }
  func.func @transform_0(%arg0: i32, %arg1: i32, %arg2: i32) -> i32 {
    %c0_i32 = arith.constant 0 : i32
    %c0_i32_0 = arith.constant 0 : i32
    return %c0_i32 : i32
  }
  func.func @transform_1(%arg0: i32, %arg1: i32, %arg2: i32) -> (i32, i32, i32) {
    %c0_i32 = arith.constant 0 : i32
    return %arg0, %arg2, %arg1 : i32, i32, i32
  }
  func.func @transform_2(%arg0: i32, %arg1: i32, %arg2: i32) -> (i32, i32) {
    %c0_i32 = arith.constant 0 : i32
    return %arg0, %arg1 : i32, i32
  }
}

</mosaic_0001>

<llo_original>
// kernel: tpu_custom_call.1
$region0: #{tpu_custom_call.1}
  #allocation0 [shape = 'u32[]', space=smem, size = 0x4, offset = 0x4, fixed_abs, tag = 'smem constant byte address 0x4 - core index']
  #allocation1 [shape = 'u32[144,128]{1,0:T(1,128)}', space=vmem, size = 0x12000, scoped, tag = 'internal scratch']
  #allocation2 [shape = 'f32[2,32]{1,0:T(2,128)}', space=vmem, size = 0x400, scoped, tag = 'scratch operand']
  #allocation3 [shape = 'f32[1]{0:T(128)S(6)}', space=smem, size = 0x200, scoped, tag = 'scoped memory for tpu_custom_call.1']
  %s0 = inlined_call_operand.<no memory space> [shape: f32[1], index: 0, kind: input, shape index: {}]
  %s1 = inlined_call_operand.hbm [shape: f32[2,8,32], index: 1, kind: input, shape index: {}]
  %s2 = inlined_call_operand.hbm [shape: f32[2,32], index: 2, kind: output, shape index: {}]
  %s3 = sld [smem:[#allocation0]]
  $region30: #{tpu_custom_call.1} parent=0
    _
  %s5 = ssub.s32 1, %s3
  %s6 = scalar_select 0, %s5, %s3
  %7 = sst [smem:[#allocation3]] %s0
  $region1: #{tpu_custom_call.1} parent=0
    #allocation4 [shape = 'u8[8192]{0}', space=vmem, size = 0x2000, scoped, tag = 'input window, operand 1, single buffered']
    #allocation5 [shape = 's32[1]{0}', space=sflag, size = 0x4, scoped, tag = 'scoped memory for tpu_custom_call.1']
    #allocation6 [shape = 's32[1]{0}', space=sflag, size = 0x4, scoped, tag = 'scoped memory for tpu_custom_call.1']
    #allocation7 [shape = 'u8[1024]{0}', space=vmem, size = 0x400, scoped, tag = 'output window, operand 0, single buffered']
    %8 = vsyncpa [#allocation5], 0
    %9 = vsyncpa [#allocation6], 0
    // Predicated region
    $region2: #{tpu_custom_call.1} parent=1 // pred_check
      _
    $region3: #{tpu_custom_call.1} parent=1 // pred_check_branch
      %11 = sbr.rel (0) target = $region5
    $region4: #{tpu_custom_call.1} parent=1 // pred_region
      _
    $region5: #{tpu_custom_call.1} parent=1 // pred_fallthru
      _
    // Predicated region
    $region6: #{tpu_custom_call.1} parent=1 // pred_check
      _
    $region7: #{tpu_custom_call.1} parent=1 // pred_check_branch
      %13 = sbr.rel (0) target = $region9
    $region8: #{tpu_custom_call.1} parent=1 // pred_region
      %s15 = ssub.s32 256, 256
      %16 = vsyncadd [#allocation5], %s15
      %s17 = sshll.u32 [#allocation4], 4
      %s18 = int_to_ptr.vmem [resolvable:$true] %s17
      %23 = dma.hbm_to_vmem [thread:$0]  %s1, 256, %s18, [#allocation5], 128, 128, 8
    $region9: #{tpu_custom_call.1} parent=1 // pred_fallthru
      _
    // Predicated region
    $region10: #{tpu_custom_call.1} parent=1 // pred_check
      _
    $region11: #{tpu_custom_call.1} parent=1 // pred_check_branch
      %25 = sbr.rel (0) target = $region13
    $region12: #{tpu_custom_call.1} parent=1 // pred_region
      %26 = dma.done [#allocation5], 256
    $region13: #{tpu_custom_call.1} parent=1 // pred_fallthru
      _
    %p27 = scmp.eq.s32.totalorder 0, 0
    // Predicated region
    $region14: #{tpu_custom_call.1} parent=1 // pred_check
      %p28 = pneg %p27
    $region15: #{tpu_custom_call.1} parent=1 // pred_check_branch
      %30 = sbr.rel (%p28) target = $region17
    $region16: #{tpu_custom_call.1} parent=1 // pred_region
      %vm31 = vcmask 254976
      %32 = vst.msk [vmem:[#allocation2] sm:$0x3] %vm31, 0.0
    $region17: #{tpu_custom_call.1} parent=1 // pred_fallthru
      _
    %v33 = vld [vmem:[#allocation4] sm:$0xff]
    %v34 = vld [vmem:[#allocation4 + $0x8] sm:$0xff]
    %v35 = vld [vmem:[#allocation2] sm:$0x3]
    %v36 = vmax.f32 %v33, 1e-06
    %v37 = vmax.f32 %v34, 1e-06
    %v38 = vmul.f32 %v36, %v36
    %v39 = vmul.f32 %v37, %v37
    %v40 = vmul.f32 %v38, %v36
    %v41 = vmul.f32 %v39, %v37
    %vm42 = vcmask 261120
    %v43 = vsel %vm42, %v40, 0.0
    %v44 = vrot.slane %v43, 4
    %v45 = vadd.f32 %v43, %v44
    %v46 = vrot.slane %v45, 2
    %v47 = vadd.f32 %v45, %v46
    %v48 = vrot.slane %v47, 1
    %v49 = vadd.f32 %v47, %v48
    %v50 = vsel %vm42, %v41, 0.0
    %v51 = vrot.slane %v50, 4
    %v52 = vadd.f32 %v50, %v51
    %v53 = vrot.slane %v52, 2
    %v54 = vadd.f32 %v52, %v53
    %v55 = vrot.slane %v54, 1
    %v56 = vadd.f32 %v54, %v55
    %vm59 = vcmask 1041409
    %v60 = vsel %vm59, %v56, %v49
    %v62 = vadd.f32 %v35, %v60
    %vm63 = vcmask 254976
    %64 = vst.msk [vmem:[#allocation2] sm:$0x3] %vm63, %v62
    // Predicated region
    $region18: #{tpu_custom_call.1} parent=1 // pred_check
      %p65 = pneg %p27
    $region19: #{tpu_custom_call.1} parent=1 // pred_check_branch
      %67 = sbr.rel (%p65) target = $region21
    $region20: #{tpu_custom_call.1} parent=1 // pred_region
      %v68 = vld [vmem:[#allocation2] sm:$0x3]
      %v69 = vmul.f32 %v68, 0.125
      %v70 = vlog2.pop %v69
      %v71 = vmul.f32 %v70, 0.6931472
      %v72 = vmul.f32 %v71, 0.33333334
      %v73 = vmul.f32 %v72, 1.442695
      %v74 = vpow.pop %v73
      %75 = vst.msk [vmem:[#allocation7] sm:$0x3] %vm63, %v74
    $region21: #{tpu_custom_call.1} parent=1 // pred_fallthru
      _
    // Predicated region
    $region22: #{tpu_custom_call.1} parent=1 // pred_check
      _
    $region23: #{tpu_custom_call.1} parent=1 // pred_check_branch
      %77 = sbr.rel (0) target = $region25
    $region24: #{tpu_custom_call.1} parent=1 // pred_region
      %s79 = ssub.s32 32, 32
      %80 = vsyncadd [#allocation6], %s79
      %s82 = sshll.u32 [#allocation7], 4
      %s83 = int_to_ptr.vmem [resolvable:$true] %s82
      %85 = dma.vmem_to_hbm [thread:$0]  %s83, 32, %s2, [#allocation6]
    $region25: #{tpu_custom_call.1} parent=1 // pred_fallthru
      _
    // Predicated region
    $region26: #{tpu_custom_call.1} parent=1 // pred_check
      _
    $region27: #{tpu_custom_call.1} parent=1 // pred_check_branch
      %87 = sbr.rel (0) target = $region29
    $region28: #{tpu_custom_call.1} parent=1 // pred_region
      %88 = dma.done [#allocation6], 32
    $region29: #{tpu_custom_call.1} parent=1 // pred_fallthru
      _
    %89 = vsyncpa [#allocation5], 1
    %90 = vsyncpa [#allocation6], 1

</llo_original>
